<compile_context>
chip_gen: v7x
topology: tpu7x:2x2x1
jax: 0.10.0
libtpu: 0.0.40
codegen_flags: <defaults>
</compile_context>

<pallas_src>
import functools
import math

import jax
import jax.numpy as jnp
from jax import lax
from jax.experimental import pallas as pl
from jax.experimental.pallas import tpu as pltpu


def _round_up(x, m):
    return ((x + m - 1) // m) * m


def _lane_pack_factor(hidden_size, param_itemsize, max_weight_bytes=8 << 20):
    """Tokens packed side-by-side so the packed width is a multiple of 128."""
    if hidden_size % 128 == 0:
        return 1
    g = 128 // math.gcd(hidden_size, 128)
    hp = g * hidden_size
    if hp * hp * param_itemsize > max_weight_bytes:
        return 1  # packed weight too big to keep VMEM resident -> no packing
    return g


def prepare_self_output_params(weight, bias, activation_dtype):
    """One-time parameter packing (hoist this out of the per-call path).

    weight: (H_out, H_in) PyTorch nn.Linear layout; bias: (H,).
    Returns:
      w_packed: (g*H, g*H) block-diagonal weight, already transposed to
                (in, out) layout -> kernel does canonical (M,K)@(K,N).
      b_packed: (1, g*H) float32 bias row.
    """
    h = weight.shape[0]
    p_dtype = jnp.dtype(activation_dtype)
    g = _lane_pack_factor(h, p_dtype.itemsize)
    w_t = jnp.asarray(weight).T.astype(p_dtype)            # (in, out)
    b = jnp.asarray(bias)
    if g > 1:
        w_p = jnp.kron(jnp.eye(g, dtype=p_dtype), w_t)     # block-diagonal
        b_p = jnp.tile(b, g)
    else:
        w_p, b_p = w_t, b
    return w_p, b_p.reshape(1, g * h).astype(jnp.float32)


def _self_output_kernel(x_ref, w_ref, b_ref, o_ref, *, precision):
    # x_ref: (TM, Hp) activation dtype   w_ref: (Hp, Hp) (in, out) layout
    # b_ref: (1, Hp) f32                 o_ref: (TM, Hp) output dtype
    x = x_ref[...]
    w = w_ref[...]
    if x.dtype != w.dtype:
        x = x.astype(w.dtype)  # in-kernel cast: VPU work hidden under DMA
    y = jnp.dot(x, w, preferred_element_type=jnp.float32, precision=precision)
    y = y + b_ref[...]         # bias broadcast over rows, f32
    # Dropout: inference mode -> identity.
    # TODO(synk): training-mode dropout via pltpu.prng_seed + prng_random_bits.
    o_ref[...] = y.astype(o_ref.dtype)


def segformer_self_output_prepacked(hidden_states, w_packed, b_packed, *,
                                    out_dtype=None, precision=None,
                                    target_block_bytes=4 << 20,
                                    min_block_bytes=1 << 20,
                                    target_steps=8):
    """Core pallas_call given already-packed params from prepare_self_output_params."""
    *lead, h = hidden_states.shape
    m = math.prod(lead)
    hp = w_packed.shape[1]
    g = hp // h
    in_dtype = jnp.dtype(hidden_states.dtype)
    out_dtype = in_dtype if out_dtype is None else jnp.dtype(out_dtype)

    # Lane-pack g tokens per row: (M, H) -> (M/g, g*H), a free row-major reshape.
    mg = _round_up(m, g)
    x = hidden_states.reshape(m, h)
    if mg != m:                       # at most g-1 extra rows, only when needed
        x = jnp.pad(x, ((0, mg - m), (0, 0)))
    rows = mg // g
    x = x.reshape(rows, hp)

    # Row-tile sizing.  Sublane multiple follows activation packing.
    row_mult = {4: 8, 2: 16, 1: 32}.get(in_dtype.itemsize, 8)
    row_bytes = hp * max(in_dtype.itemsize, out_dtype.itemsize)
    tm_cap = max(row_mult, (target_block_bytes // row_bytes) // row_mult * row_mult)
    tm_floor = max(row_mult, (min_block_bytes // row_bytes) // row_mult * row_mult)
    tm_steps = _round_up(pl.cdiv(rows, target_steps), row_mult)
    tm = min(tm_cap, max(tm_floor, tm_steps))
    tm = min(tm, _round_up(rows, row_mult))        # never bigger than the data
    if rows > row_mult:                            # >=2 steps -> both megacore TCs busy
        tm = min(tm, _round_up(pl.cdiv(rows, 2), row_mult))
    tm = max(row_mult, tm)
    grid = (pl.cdiv(rows, tm),)                    # Pallas masks the partial last block

    w_itemsize = jnp.dtype(w_packed.dtype).itemsize
    vmem_need = (2 * tm * hp * (in_dtype.itemsize + out_dtype.itemsize)  # dbl-buffered io
                 + 2 * hp * hp * w_itemsize + 2 * hp * 4)                # weight + bias
    vmem_limit = int(min(max(vmem_need + (4 << 20), 16 << 20), 32 << 20))

    cost = pl.CostEstimate(
        flops=2 * m * h * h,
        transcendentals=0,
        bytes_accessed=(m * h * (in_dtype.itemsize + out_dtype.itemsize)
                        + hp * hp * w_itemsize + hp * 4))

    out = pl.pallas_call(
        functools.partial(_self_output_kernel, precision=precision),
        out_shape=jax.ShapeDtypeStruct((rows, hp), out_dtype),
        grid=grid,
        in_specs=[
            pl.BlockSpec((tm, hp), lambda i: (i, 0)),   # activations: tiled over rows
            pl.BlockSpec((hp, hp), lambda i: (0, 0)),   # weight: VMEM resident
            pl.BlockSpec((1, hp), lambda i: (0, 0)),    # bias: VMEM resident
        ],
        out_specs=pl.BlockSpec((tm, hp), lambda i: (i, 0)),
        compiler_params=pltpu.CompilerParams(
            dimension_semantics=("parallel",),
            vmem_limit_bytes=vmem_limit),
        cost_estimate=cost,
    )(x, w_packed, b_packed)

    out = out.reshape(mg, h)
    if mg != m:
        out = out[:m]
    return out.reshape(*lead, h)


def segformer_self_output(hidden_states, input_tensor, weight, bias, **kwargs):
    """SegformerSelfOutput.forward: Linear(hidden_states) then Dropout (identity in eval).

    `input_tensor` is accepted for parity with the PyTorch module but is unused
    (exactly as in the reference forward).  For repeated calls, hoist
    `prepare_self_output_params` and call `segformer_self_output_prepacked`.
    """
    del input_tensor
    w_p, b_p = prepare_self_output_params(weight, bias, hidden_states.dtype)
    return segformer_self_output_prepacked(hidden_states, w_p, b_p, **kwargs)


if __name__ == "__main__":
    key = jax.random.PRNGKey(0)

    def make_case(k, b, s, h, dtype):
        k1, k2, k3, k4 = jax.random.split(k, 4)
        hs = jax.random.normal(k1, (b, s, h), jnp.float32).astype(dtype)
        res = jax.random.normal(k2, (b, s, h), jnp.float32).astype(dtype)
        w = jax.random.normal(k3, (h, h), jnp.float32) / jnp.sqrt(h)
        bias = jax.random.normal(k4, (h,), jnp.float32) * 0.02
        return hs, res, w, bias

    def reference(hs, w, bias):
        # nn.Linear: x @ W.T + b; kernel casts the weight to the activation dtype.
        hs32 = hs.astype(jnp.float32)
        w32 = w.astype(hs.dtype).astype(jnp.float32)
        return jnp.einsum("bsh,oh->bso", hs32, w32) + bias

    fwd = jax.jit(segformer_self_output)
    keys = jax.random.split(key, 3)

    # 1) f32, H=32 (Segformer stage-1 width); M divisible by the packing factor.
    hs, res, w, bias = make_case(keys[0], 2, 8, 32, jnp.float32)
    out = jax.block_until_ready(fwd(hs, res, w, bias))
    assert out.shape == hs.shape and out.dtype == jnp.float32
    assert jnp.allclose(out, reference(hs, w, bias), atol=2e-2, rtol=2e-2)

    # 2) f32, H=160 (stage-3 width, not a multiple of 128) with M=18 not divisible
    #    by g=4 -> exercises wide lane packing and the masked partial last block.
    hs, res, w, bias = make_case(keys[1], 2, 9, 160, jnp.float32)
    out = jax.block_until_ready(fwd(hs, res, w, bias))
    assert out.shape == hs.shape
    assert jnp.allclose(out, reference(hs, w, bias), atol=2e-2, rtol=2e-2)

    # 3) bf16 activations handed in by the caller (no wrapper cast pass), H=64.
    hs, res, w, bias = make_case(keys[2], 2, 8, 64, jnp.bfloat16)
    out = jax.block_until_ready(fwd(hs, res, w, bias))
    assert out.dtype == jnp.bfloat16
    assert jnp.allclose(out.astype(jnp.float32), reference(hs, w, bias),
                        atol=5e-2, rtol=5e-2)

    print("KERNEL_OK")
</pallas_src>

<mosaic_0001>
module attributes {stable_mosaic.version = 11 : i64} {
  func.func @_self_output_kernel(%arg0: i32, %arg1: memref<8x128xf32, #tpu.memory_space<vmem>>, %arg2: memref<128x128xf32, #tpu.memory_space<vmem>>, %arg3: memref<1x128xf32, #tpu.memory_space<vmem>>, %arg4: memref<8x128xf32, #tpu.memory_space<vmem>>) attributes {dimension_semantics = [#tpu.dimension_semantics<parallel>], iteration_bounds = array<i64: 1>, scalar_prefetch = 0 : i64, scratch_operands = 0 : i64, tpu.core_type = #tpu.core_type<tc>, window_params = [{transform_indices = @transform_0, window_bounds = array<i64: 8, 128>}, {pipeline_mode = #tpu.pipeline_mode<synchronous>, transform_indices = @transform_1, window_bounds = array<i64: 128, 128>}, {pipeline_mode = #tpu.pipeline_mode<synchronous>, transform_indices = @transform_2, window_bounds = array<i64: 1, 128>}, {transform_indices = @transform_3, window_bounds = array<i64: 8, 128>}]} {
    %c0 = arith.constant 0 : index
    %c0_0 = arith.constant 0 : index
    %0 = vector.load %arg1[%c0, %c0_0] : memref<8x128xf32, #tpu.memory_space<vmem>>, vector<8x128xf32>
    %c0_1 = arith.constant 0 : index
    %c0_2 = arith.constant 0 : index
    %1 = vector.load %arg2[%c0_1, %c0_2] : memref<128x128xf32, #tpu.memory_space<vmem>>, vector<128x128xf32>
    %cst = arith.constant dense<0.000000e+00> : vector<8x128xf32>
    %2 = tpu.matmul %0, %1, %cst {dimension_numbers = #tpu.dot_dimension_numbers<[1], [0], [0], [1], [0, 0, 1, 1], [], []>} : vector<8x128xf32>, vector<128x128xf32>, vector<8x128xf32> -> vector<8x128xf32>
    %c0_3 = arith.constant 0 : index
    %c0_4 = arith.constant 0 : index
    %3 = vector.load %arg3[%c0_3, %c0_4] : memref<1x128xf32, #tpu.memory_space<vmem>>, vector<1x128xf32>
    %4 = vector.broadcast %3 : vector<1x128xf32> to vector<8x128xf32>
    %5 = arith.addf %2, %4 : vector<8x128xf32>
    %c0_5 = arith.constant 0 : index
    %c0_6 = arith.constant 0 : index
    %6 = vector.load %arg4[%c0_5, %c0_6] : memref<8x128xf32, #tpu.memory_space<vmem>>, vector<8x128xf32>
    tpu.vector_store %arg4[%c0_5, %c0_6], %5 {strides = array<i32>} : memref<8x128xf32, #tpu.memory_space<vmem>>, vector<8x128xf32>,
    return
  }
  func.func @transform_0(%arg0: i32) -> (i32, i32) {
    %c0_i32 = arith.constant 0 : i32
    %c0_i32_0 = arith.constant 0 : i32
    return %arg0, %c0_i32 : i32, i32
  }
  func.func @transform_1(%arg0: i32) -> (i32, i32) {
    %c0_i32 = arith.constant 0 : i32
    %c0_i32_0 = arith.constant 0 : i32
    %c0_i32_1 = arith.constant 0 : i32
    return %c0_i32, %c0_i32_0 : i32, i32
  }
  func.func @transform_2(%arg0: i32) -> (i32, i32) {
    %c0_i32 = arith.constant 0 : i32
    %c0_i32_0 = arith.constant 0 : i32
    %c0_i32_1 = arith.constant 0 : i32
    return %c0_i32, %c0_i32_0 : i32, i32
  }
  func.func @transform_3(%arg0: i32) -> (i32, i32) {
    %c0_i32 = arith.constant 0 : i32
    %c0_i32_0 = arith.constant 0 : i32
    return %arg0, %c0_i32 : i32, i32
  }
}

</mosaic_0001>

<llo_original>
// kernel: tile.8
$region0: #{tile.8}
  #allocation0 [shape = 's32[1]{0}', space=sflag, size = 0x4, scoped, tag = 'scoped memory for tile.8']
  %s0 = inlined_call_operand.vmem [shape: f32[32], index: 0, kind: input, shape index: {}]
  %s1 = inlined_call_operand.vmem [shape: f32[4,32], index: 1, kind: output, shape index: {}]
  // Predicated region
  $region2: #{tile.8} parent=0 // pred_check
    _
  $region3: #{tile.8} parent=0 // pred_check_branch
    %3 = sbr.rel (0) target = $region5
  $region4: #{tile.8} parent=0 // pred_region
    _
  $region5: #{tile.8} parent=0 // pred_fallthru
    _
  %v4 = vld [vmem:[%s0] ss:$0 sm:$0xff]
  %5 = vst [vmem:[%s1] sm:$0xf] %v4

// kernel: tile.9
$region0: #{tile.9}
  %s0 = inlined_call_operand.vmem [shape: f32[4,32], index: 0, kind: input, shape index: {}]
  %s1 = inlined_call_operand.vmem [shape: f32[1,128], index: 1, kind: output, shape index: {}]
  $region1: #{tile.9} parent=0
    #allocation0 [shape = 'u8[4096]{0}', space=vmem, size = 0x1000, scoped, tag = 'scoped mem for output reshape']
    #allocation1 [shape = 'u8[4096]{0}', space=vmem, size = 0x1000, scoped, tag = 'scoped mem for input reshape']
    %s3 = sshllo.u32 0, 4
    %v4 = vld [vmem:[%s0] sm:%s3]
    %5 = vst [vmem:[#allocation1] sm:%s3] %v4
    %v6 = vld [vmem:[#allocation1] sm:$0x1]
    %vm7 = vcmask 261120
    %8 = vst.msk [vmem:[#allocation0] sm:$0x1] %vm7, %v6
    %s9 = scalar_lea.vmem [#allocation1], 3
    %v10 = vld [vmem:[%s9] sm:$0x1]
    %11 = vrot.lane.b32.xlu0 %v10, 96
    %v12 = vpop.permute.xlu0 %11
    %vm13 = vcmask 1048320
    %14 = vst.msk [vmem:[#allocation0] sm:$0x1] %vm13, %v12
    %s15 = scalar_lea.vmem [#allocation1], 2
    %v16 = vld [vmem:[%s15] sm:$0x1]
    %17 = vrot.lane.b32.xlu0 %v16, 64
    %v18 = vpop.permute.xlu0 %17
    %vm19 = vcmask 785920
    %20 = vst.msk [vmem:[#allocation0] sm:$0x1] %vm19, %v18
    %s21 = scalar_lea.vmem [#allocation1], 1
    %v22 = vld [vmem:[%s21] sm:$0x1]
    %23 = vrot.lane.b32.xlu0 %v22, 32
    %v24 = vpop.permute.xlu0 %23
    %vm25 = vcmask 523520
    %26 = vst.msk [vmem:[#allocation0] sm:$0x1] %vm25, %v24
    %s28 = sshllo.u32 0, 1
    %v30 = vld [vmem:[#allocation0] sm:%s28]
    %s31 = sshllo.u32 0, 1
    %32 = vst [vmem:[%s1] sm:%s31] %v30

// kernel: segformer_self_output.1
$region0: #{segformer_self_output.1}
  #allocation0 [shape = 'u32[]', space=smem, size = 0x4, offset = 0x4, fixed_abs, tag = 'smem constant byte address 0x4 - core index']
  #allocation1 [shape = 'u32[144,128]{1,0:T(1,128)}', space=vmem, size = 0x12000, scoped, tag = 'internal scratch']
  %s0 = inlined_call_operand.vmem [shape: f32[4,128], index: 0, kind: input, shape index: {}]
  %s1 = inlined_call_operand.vmem [shape: f32[128,128], index: 1, kind: input, shape index: {}]
  %s2 = inlined_call_operand.vmem [shape: f32[1,128], index: 2, kind: input, shape index: {}]
  %s3 = inlined_call_operand.vmem [shape: f32[4,128], index: 3, kind: output, shape index: {}]
  %s4 = sld [smem:[#allocation0]]
  $region52: #{segformer_self_output.1} parent=0
    _
  %s6 = ssub.s32 1, %s4
  %s7 = scalar_select 0, %s6, %s4
  $region1: #{segformer_self_output.1} parent=0
    #allocation2 [shape = 'u8[4096]{0}', space=vmem, size = 0x1000, scoped, tag = 'output window, operand 0, single buffered']
    // Predicated region
    $region2: #{segformer_self_output.1} parent=1 // pred_check
      _
    $region3: #{segformer_self_output.1} parent=1 // pred_check_branch
      %9 = sbr.rel (0) target = $region5
    $region4: #{segformer_self_output.1} parent=1 // pred_region
      _
    $region5: #{segformer_self_output.1} parent=1 // pred_fallthru
      _
    // Predicated region
    $region6: #{segformer_self_output.1} parent=1 // pred_check
      _
    $region7: #{segformer_self_output.1} parent=1 // pred_check_branch
      %11 = sbr.rel (0) target = $region9
    $region8: #{segformer_self_output.1} parent=1 // pred_region
      _
    $region9: #{segformer_self_output.1} parent=1 // pred_fallthru
      _
    // Predicated region
    $region10: #{segformer_self_output.1} parent=1 // pred_check
      _
    $region11: #{segformer_self_output.1} parent=1 // pred_check_branch
      %13 = sbr.rel (0) target = $region13
    $region12: #{segformer_self_output.1} parent=1 // pred_region
      _
    $region13: #{segformer_self_output.1} parent=1 // pred_fallthru
      _
    %v14 = vld [vmem:[%s0] sm:$0xff]
    %v15 = vld [vmem:[%s1] sm:$0xff]
    %v16 = vld [vmem:[%s1 + $0x8] sm:$0xff]
    %v17 = vld [vmem:[%s1 + $0x10] sm:$0xff]
    %v18 = vld [vmem:[%s1 + $0x18] sm:$0xff]
    %v19 = vld [vmem:[%s1 + $0x20] sm:$0xff]
    %v20 = vld [vmem:[%s1 + $0x28] sm:$0xff]
    %v21 = vld [vmem:[%s1 + $0x30] sm:$0xff]
    %v22 = vld [vmem:[%s1 + $0x38] sm:$0xff]
    %v23 = vld [vmem:[%s1 + $0x40] sm:$0xff]
    %v24 = vld [vmem:[%s1 + $0x48] sm:$0xff]
    %v25 = vld [vmem:[%s1 + $0x50] sm:$0xff]
    %v26 = vld [vmem:[%s1 + $0x58] sm:$0xff]
    %v27 = vld [vmem:[%s1 + $0x60] sm:$0xff]
    %v28 = vld [vmem:[%s1 + $0x68] sm:$0xff]
    %v29 = vld [vmem:[%s1 + $0x70] sm:$0xff]
    %v30 = vld [vmem:[%s1 + $0x78] sm:$0xff]
    %v31 = vld [vmem:[%s2] sm:$0x1]
    %v33 = vlaneseq
    %v34 = vshrl.u32 %v33, 7
    %v35 = vsub.s32 0, %v34
    %v36 = vrot.slane %v31, %v35
    %38 = vmatprep.subr.mxu0 0.0
    %39 = vmatpush1.msra.mxu0 %v15
    %40 = vmatprep.subr.mxu0 0.0
    %41 = vmatpush1.msra.mxu0 %v16
    %42 = vmatprep.subr.mxu0 0.0
    %43 = vmatpush1.msra.mxu0 %v17
    %44 = vmatprep.subr.mxu0 0.0
    %45 = vmatpush1.msra.mxu0 %v18
    %46 = vmatprep.subr.mxu0 0.0
    %47 = vmatpush1.msra.mxu0 %v19
    %48 = vmatprep.subr.mxu0 0.0
    %49 = vmatpush1.msra.mxu0 %v20
    %50 = vmatprep.subr.mxu0 0.0
    %51 = vmatpush1.msra.mxu0 %v21
    %52 = vmatprep.subr.mxu0 0.0
    %53 = vmatpush1.msra.mxu0 %v22
    %54 = vmatprep.subr.mxu0 0.0
    %55 = vmatpush1.msra.mxu0 %v23
    %56 = vmatprep.subr.mxu0 0.0
    %57 = vmatpush1.msra.mxu0 %v24
    %58 = vmatprep.subr.mxu0 0.0
    %59 = vmatpush1.msra.mxu0 %v25
    %60 = vmatprep.subr.mxu0 0.0
    %61 = vmatpush1.msra.mxu0 %v26
    %62 = vmatprep.subr.mxu0 0.0
    %63 = vmatpush1.msra.mxu0 %v27
    %64 = vmatprep.subr.mxu0 0.0
    %65 = vmatpush1.msra.mxu0 %v28
    %66 = vmatprep.subr.mxu0 0.0
    %67 = vmatpush1.msra.mxu0 %v29
    %68 = vmatprep.subr.mxu0 0.0
    %69 = vmatpush1.msra.mxu0 %v30
    %70 = vmatprep.subr.mxu0 0.0
    %71 = vmatpush1.msra.mxu0 0.0
    %72 = vmatprep.subr.mxu0 0.0
    %73 = vmatpush1.msra.mxu0 0.0
    %74 = vmatprep.subr.mxu0 0.0
    %75 = vmatpush1.msra.mxu0 0.0
    %76 = vmatprep.subr.mxu0 0.0
    %77 = vmatpush1.msra.mxu0 0.0
    %78 = vmatprep.subr.mxu0 0.0
    %79 = vmatpush1.msra.mxu0 0.0
    %80 = vmatprep.subr.mxu0 0.0
    %81 = vmatpush1.msra.mxu0 0.0
    %82 = vmatprep.subr.mxu0 0.0
    %83 = vmatpush1.msra.mxu0 0.0
    %84 = vmatprep.subr.mxu0 0.0
    %85 = vmatpush1.msra.mxu0 0.0
    %86 = vmatprep.subr.mxu0 0.0
    %87 = vmatpush1.msra.mxu0 0.0
    %88 = vmatprep.subr.mxu0 0.0
    %89 = vmatpush1.msra.mxu0 0.0
    %90 = vmatprep.subr.mxu0 0.0
    %91 = vmatpush1.msra.mxu0 0.0
    %92 = vmatprep.subr.mxu0 0.0
    %93 = vmatpush1.msra.mxu0 0.0
    %94 = vmatprep.subr.mxu0 0.0
    %95 = vmatpush1.msra.mxu0 0.0
    %96 = vmatprep.subr.mxu0 0.0
    %97 = vmatpush1.msra.mxu0 0.0
    %98 = vmatprep.subr.mxu0 0.0
    %99 = vmatpush1.msra.mxu0 0.0
    %100 = vmatprep.subr.mxu0 0.0
    %101 = vmatpush1.msra.mxu0 0.0
    %102 = vmatprep.mubr.f32.mxu0 0.0
    %103 = vmatmul.mubr.f32.gmra.mrb[0].mxu0 %v14
    %v104 = vpop.f32.mrb[0].mxu0
    %v105 = vadd.f32 %v36, %v104
    %v106 = vpop.f32.mrb[0].mxu0
    %107 = vdwg.mxu0
    %108 = vst [vmem:[#allocation2] sm:$0xff] %v105
    // Predicated region
    $region14: #{segformer_self_output.1} parent=1 // pred_check
      _
    $region15: #{segformer_self_output.1} parent=1 // pred_check_branch
      %110 = sbr.rel (0) target = $region17
    $region16: #{segformer_self_output.1} parent=1 // pred_region
      // Predicated region
      $region18: #{segformer_self_output.1} parent=16 // pred_check
        _
      $region19: #{segformer_self_output.1} parent=16 // pred_check_branch
        %112 = sbr.rel (0) target = $region21
      $region20: #{segformer_self_output.1} parent=16 // pred_region
        // Predicated region
        $region22: #{segformer_self_output.1} parent=20 // pred_check
          _
        $region23: #{segformer_self_output.1} parent=20 // pred_check_branch
          %114 = sbr.rel target = $region25
        $region24: #{segformer_self_output.1} parent=20 // pred_region
          // Predicated region
          $region37: #{segformer_self_output.1} parent=24 // pred_check
            _
          $region38: #{segformer_self_output.1} parent=24 // pred_check_branch
            %129 = sbr.rel (0) target = $region40
          $region39: #{segformer_self_output.1} parent=24 // pred_region
            loop: start=0, step=1, limit=1
            $region41: #{segformer_self_output.1} parent=39 // loop_pre_header
              _
            $region42: #{segformer_self_output.1} parent=39 // loop_header
              %s132 = sphi 0, %s136
              %p133 = scmp.ge.s32.totalorder %s132, 1
              %s137 = sphi [#allocation2], [#allocation2]
              %s138 = sphi %s3, %s3
            $region43: #{segformer_self_output.1} parent=39 // loop_header_branch
              %135 = sbr.rel (%p133) target = $region47
            $region44: #{segformer_self_output.1} parent=39 // loop_body
              %v139 = vld [vmem:[%s137] sm:$0xf]
              %140 = vst [vmem:[%s138] sm:$0xf] %v139
            $region45: #{segformer_self_output.1} parent=39 // loop_footer
              %s136 = sadd.s32 1, %s132
            $region46: #{segformer_self_output.1} parent=39 // loop_footer_branch
              %131 = sbr.rel target = $region42
            $region47: #{segformer_self_output.1} parent=39 // loop_exit
              _
          $region40: #{segformer_self_output.1} parent=24 // pred_fallthru
            _
        $region25: #{segformer_self_output.1} parent=20 // pred_fallthru
          _
        // Predicated region
        $region26: #{segformer_self_output.1} parent=20 // pred_check
          _
        $region27: #{segformer_self_output.1} parent=20 // pred_check_branch
          %116 = sbr.rel (0) target = $region29
        $region28: #{segformer_self_output.1} parent=20 // pred_region
          loop: start=0, step=1, limit=1
          $region30: #{segformer_self_output.1} parent=28 // loop_pre_header
            _
          $region31: #{segformer_self_output.1} parent=28 // loop_header
            %s119 = sphi 0, %s123
            %p120 = scmp.ge.s32.totalorder %s119, 1
            %s124 = sphi [#allocation2], [#allocation2]
            %s125 = sphi %s3, %s3
          $region32: #{segformer_self_output.1} parent=28 // loop_header_branch
            %122 = sbr.rel (%p120) target = $region36
          $region33: #{segformer_self_output.1} parent=28 // loop_body
            %v126 = vld [vmem:[%s124] sm:$0xf]
            %127 = vst [vmem:[%s125] sm:$0xf] %v126
          $region34: #{segformer_self_output.1} parent=28 // loop_footer
            %s123 = sadd.s32 1, %s119
          $region35: #{segformer_self_output.1} parent=28 // loop_footer_branch
            %118 = sbr.rel target = $region31
          $region36: #{segformer_self_output.1} parent=28 // loop_exit
            _
        $region29: #{segformer_self_output.1} parent=20 // pred_fallthru
          _
      $region21: #{segformer_self_output.1} parent=16 // pred_fallthru
        _
      %141 = vnop
    $region17: #{segformer_self_output.1} parent=1 // pred_fallthru
      _
    // Predicated region
    $region48: #{segformer_self_output.1} parent=1 // pred_check
      _
    $region49: #{segformer_self_output.1} parent=1 // pred_check_branch
      %143 = sbr.rel (0) target = $region51
    $region50: #{segformer_self_output.1} parent=1 // pred_region
      _
    $region51: #{segformer_self_output.1} parent=1 // pred_fallthru
      _

</llo_original>
